<compile_context>
chip_gen: v7x
topology: tpu7x:2x2x1
jax: 0.10.0
libtpu: 0.0.40
codegen_flags: <defaults>
</compile_context>

<pallas_src>
import functools

import jax
import jax.numpy as jnp
from jax import lax
from jax.experimental import pallas as pl
from jax.experimental.pallas import tpu as pltpu


def _num_tensorcores():
  """Best-effort TensorCore-per-device count (2 on v4 megacore / v7x)."""
  try:
    kind = (getattr(jax.devices()[0], "device_kind", "") or "").lower()
    if "v7" in kind or "v4" in kind:
      return 2
  except Exception:  # pragma: no cover - defensive only
    pass
  return 1


def _postprocess_kernel(obj_logits_ref, verb_logits_ref, sub_boxes_ref,
                        obj_boxes_ref, scale_ref,
                        labels_ref, verb_out_ref, sub_out_ref, obj_out_ref,
                        *, num_fg):
  # ---- object class scores / labels (softmax-divide-free) -----------------
  logits = obj_logits_ref[...].astype(jnp.float32)            # (n, C)

  col = lax.broadcasted_iota(jnp.int32, logits.shape, 1)       # class index
  fg = col < num_fg                                            # drop no-object
  fg_logits = jnp.where(fg, logits, -jnp.inf)
  m_fg = jnp.max(fg_logits, axis=-1, keepdims=True)            # (n, 1)
  # full max over C == max(foreground max, background logit): one XLU reduce
  m = jnp.maximum(m_fg, logits[:, num_fg:num_fg + 1])          # (n, 1)
  denom = jnp.sum(jnp.exp(logits - m), axis=-1, keepdims=True)  # (n, 1)
  # max foreground softmax prob == exp(max_fg_logit - m) / sum(exp(x - m))
  obj_scores = jnp.exp(m_fg - m) / denom                       # (n, 1)

  # first-index argmax over foreground logits (== argmax of softmax probs)
  labels_ref[...] = jnp.min(
      jnp.where(fg & (fg_logits >= m_fg), col, jnp.int32(num_fg)),
      axis=-1, keepdims=True)                                  # (n, 1) int32

  # ---- verb scores: sigmoid(verb_logits) * obj_score ----------------------
  verb = verb_logits_ref[...].astype(jnp.float32)
  verb_out_ref[...] = jax.nn.sigmoid(verb) * obj_scores

  # ---- boxes: cxcywh -> xyxy on the VPU, scaled, one store per half -------
  scale4 = scale_ref[...]                                      # (n, 4) [w,h,w,h]

  def cxcywh_to_xyxy_scaled(box_ref):
    box = box_ref[...].astype(jnp.float32)                     # (n, 4)
    cxcy = box[:, 0:2]
    half = 0.5 * box[:, 2:4]
    # build the full 4-lane row once -> single unmasked-per-row store
    return jnp.concatenate([cxcy - half, cxcy + half], axis=-1) * scale4

  sub_out_ref[...] = cxcywh_to_xyxy_scaled(sub_boxes_ref)
  obj_out_ref[...] = cxcywh_to_xyxy_scaled(obj_boxes_ref)


def _run_pallas(obj_logits2, verb_logits2, sub2, obj2, scale2,
                *, num_fg, num_blocks):
  N, C = obj_logits2.shape
  V = verb_logits2.shape[-1]
  nb = N // num_blocks

  kernel = functools.partial(_postprocess_kernel, num_fg=num_fg)

  grid_spec = pltpu.PrefetchScalarGridSpec(
      num_scalar_prefetch=0,
      grid=(num_blocks,),
      in_specs=[
          pl.BlockSpec((nb, C), lambda i: (i, 0)),
          pl.BlockSpec((nb, V), lambda i: (i, 0)),
          pl.BlockSpec((nb, 4), lambda i: (i, 0)),
          pl.BlockSpec((nb, 4), lambda i: (i, 0)),
          pl.BlockSpec((nb, 4), lambda i: (i, 0)),
      ],
      out_specs=[
          pl.BlockSpec((nb, 1), lambda i: (i, 0)),
          pl.BlockSpec((nb, V), lambda i: (i, 0)),
          pl.BlockSpec((nb, 4), lambda i: (i, 0)),
          pl.BlockSpec((nb, 4), lambda i: (i, 0)),
      ],
  )

  out_shape = (
      jax.ShapeDtypeStruct((N, 1), jnp.int32),    # obj labels
      jax.ShapeDtypeStruct((N, V), jnp.float32),  # verb scores
      jax.ShapeDtypeStruct((N, 4), jnp.float32),  # sub boxes, xyxy * scale
      jax.ShapeDtypeStruct((N, 4), jnp.float32),  # obj boxes, xyxy * scale
  )

  in_bytes = int(sum(x.size * x.dtype.itemsize
                     for x in (obj_logits2, verb_logits2, sub2, obj2, scale2)))
  out_bytes = int(N * 1 * 4 + N * V * 4 + 2 * N * 4 * 4)
  cost = pl.CostEstimate(
      flops=int(10 * N * C + 4 * N * V + 12 * N),
      transcendentals=int(N * (C + V)),
      bytes_accessed=in_bytes + out_bytes)

  return pl.pallas_call(
      kernel,
      out_shape=out_shape,
      grid_spec=grid_spec,
      compiler_params=pltpu.CompilerParams(
          dimension_semantics=(
              ("parallel",) if num_blocks > 1 else ("arbitrary",))),
      cost_estimate=cost,
  )(obj_logits2, verb_logits2, sub2, obj2, scale2)


def postprocess_hoi(outputs, target_sizes, subject_category_id):
  """JAX/Pallas equivalent of PostProcessHOI_orig.forward."""
  obj_logits = outputs['pred_obj_logits']     # native dtype, no wrapper cast
  verb_logits = outputs['pred_verb_logits']
  sub_boxes = outputs['pred_sub_boxes']
  obj_boxes = outputs['pred_obj_boxes']

  assert obj_logits.shape[0] == target_sizes.shape[0]
  assert target_sizes.shape[1] == 2

  B, Q, C = obj_logits.shape
  V = verb_logits.shape[-1]
  N = B * Q

  img_h = target_sizes[:, 0].astype(jnp.float32)
  img_w = target_sizes[:, 1].astype(jnp.float32)
  scale_fct = jnp.stack([img_w, img_h, img_w, img_h], axis=1)        # (B, 4)
  scale_rows = jnp.broadcast_to(
      scale_fct[:, None, :], (B, Q, 4)).reshape(N, 4)                # (N, 4)

  # 2-way row split only when the chip has >1 TensorCore AND halves stay
  # sublane-aligned; single grid step otherwise (v5e / v6e).
  num_blocks = 2 if (_num_tensorcores() >= 2 and N % 16 == 0) else 1

  labels_2d, verb_scores_2d, sub_xyxy, obj_xyxy = _run_pallas(
      obj_logits.reshape(N, C), verb_logits.reshape(N, V),
      sub_boxes.reshape(N, 4), obj_boxes.reshape(N, 4), scale_rows,
      num_fg=C - 1, num_blocks=num_blocks)

  obj_labels = labels_2d.reshape(B, Q)
  verb_scores = verb_scores_2d.reshape(B, Q, V)
  boxes = jnp.concatenate(
      [sub_xyxy.reshape(B, Q, 4), obj_xyxy.reshape(B, Q, 4)], axis=1)
  labels = jnp.concatenate(
      [jnp.full((B, Q), subject_category_id, obj_labels.dtype), obj_labels],
      axis=1)

  ids = jnp.arange(2 * Q)
  # Per-image python list-of-dicts packaging (host-side glue in the original).
  results = []
  for b in range(B):
    results.append({
        'labels': labels[b],
        'boxes': boxes[b],
        'verb_scores': verb_scores[b],
        'sub_ids': ids[:Q],
        'obj_ids': ids[Q:],
    })
  return results


def _reference(outputs, target_sizes, subject_category_id):
  """Pure-JAX reference mirroring the PyTorch forward."""
  obj_logits = outputs['pred_obj_logits'].astype(jnp.float32)
  verb_logits = outputs['pred_verb_logits'].astype(jnp.float32)
  sub_boxes = outputs['pred_sub_boxes'].astype(jnp.float32)
  obj_boxes = outputs['pred_obj_boxes'].astype(jnp.float32)

  obj_prob = jax.nn.softmax(obj_logits, axis=-1)
  obj_scores = obj_prob[..., :-1].max(-1)
  obj_labels = obj_prob[..., :-1].argmax(-1)
  verb_scores = jax.nn.sigmoid(verb_logits)

  img_h = target_sizes[:, 0].astype(jnp.float32)
  img_w = target_sizes[:, 1].astype(jnp.float32)
  scale = jnp.stack([img_w, img_h, img_w, img_h], axis=1)[:, None, :]

  def cxcywh_to_xyxy(b):
    cx, cy, w, h = b[..., 0], b[..., 1], b[..., 2], b[..., 3]
    return jnp.stack([cx - 0.5 * w, cy - 0.5 * h, cx + 0.5 * w, cy + 0.5 * h], -1)

  sub_xyxy = cxcywh_to_xyxy(sub_boxes) * scale
  obj_xyxy = cxcywh_to_xyxy(obj_boxes) * scale
  vs = verb_scores * obj_scores[..., None]
  labels = jnp.concatenate(
      [jnp.full_like(obj_labels, subject_category_id), obj_labels], axis=1)
  boxes = jnp.concatenate([sub_xyxy, obj_xyxy], axis=1)
  return labels, boxes, vs


if __name__ == "__main__":
  B, Q, C, V = 2, 8, 7, 16   # C includes the no-object class
  SUBJECT_CATEGORY_ID = 1

  key = jax.random.PRNGKey(0)
  k1, k2, k3, k4 = jax.random.split(key, 4)
  outputs = {
      'pred_obj_logits': jax.random.normal(k1, (B, Q, C), jnp.float32),
      'pred_verb_logits': jax.random.normal(k2, (B, Q, V), jnp.float32),
      'pred_sub_boxes': jax.nn.sigmoid(jax.random.normal(k3, (B, Q, 4), jnp.float32)),
      'pred_obj_boxes': jax.nn.sigmoid(jax.random.normal(k4, (B, Q, 4), jnp.float32)),
  }
  target_sizes = jnp.array([[480.0, 640.0], [512.0, 512.0]], jnp.float32)

  results = postprocess_hoi(outputs, target_sizes, SUBJECT_CATEGORY_ID)
  jax.block_until_ready(results)

  # quick correctness check against a pure-JAX reference
  ref_labels, ref_boxes, ref_vs = _reference(outputs, target_sizes,
                                             SUBJECT_CATEGORY_ID)
  for b in range(B):
    assert jnp.array_equal(results[b]['labels'], ref_labels[b])
    assert jnp.allclose(results[b]['boxes'], ref_boxes[b], atol=1e-4, rtol=1e-4)
    assert jnp.allclose(results[b]['verb_scores'], ref_vs[b], atol=1e-5, rtol=1e-5)

  print("KERNEL_OK")
</pallas_src>

<mosaic_0001>
module attributes {stable_mosaic.version = 11 : i64} {
  func.func @_postprocess_kernel(%arg0: i32, %arg1: memref<16x7xf32, #tpu.memory_space<vmem>>, %arg2: memref<16x16xf32, #tpu.memory_space<vmem>>, %arg3: memref<16x4xf32, #tpu.memory_space<vmem>>, %arg4: memref<16x4xf32, #tpu.memory_space<vmem>>, %arg5: memref<16x4xf32, #tpu.memory_space<vmem>>, %arg6: memref<16x1xi32, #tpu.memory_space<vmem>>, %arg7: memref<16x16xf32, #tpu.memory_space<vmem>>, %arg8: memref<16x4xf32, #tpu.memory_space<vmem>>, %arg9: memref<16x4xf32, #tpu.memory_space<vmem>>) attributes {dimension_semantics = [#tpu.dimension_semantics<arbitrary>], iteration_bounds = array<i64: 1>, scalar_prefetch = 0 : i64, scratch_operands = 0 : i64, tpu.core_type = #tpu.core_type<tc>, window_params = [{transform_indices = @transform_0, window_bounds = array<i64: 16, 7>}, {transform_indices = @transform_1, window_bounds = array<i64: 16, 16>}, {transform_indices = @transform_2, window_bounds = array<i64: 16, 4>}, {transform_indices = @transform_3, window_bounds = array<i64: 16, 4>}, {transform_indices = @transform_4, window_bounds = array<i64: 16, 4>}, {transform_indices = @transform_5, window_bounds = array<i64: 16, 1>}, {transform_indices = @transform_6, window_bounds = array<i64: 16, 16>}, {transform_indices = @transform_7, window_bounds = array<i64: 16, 4>}, {transform_indices = @transform_8, window_bounds = array<i64: 16, 4>}]} {
    %c0 = arith.constant 0 : index
    %c0_0 = arith.constant 0 : index
    %0 = vector.load %arg1[%c0, %c0_0] : memref<16x7xf32, #tpu.memory_space<vmem>>, vector<16x7xf32>
    %1 = tpu.iota {dimensions = array<i32: 1>} : vector<16x7xi32>
    %c6_i32 = arith.constant 6 : i32
    %2 = vector.broadcast %c6_i32 : i32 to vector<16x7xi32>
    %3 = arith.cmpi slt, %1, %2 : vector<16x7xi32>
    %cst = arith.constant 0xFF800000 : f32
    %4 = vector.broadcast %cst : f32 to vector<16x7xf32>
    %5 = arith.select %3, %0, %4 : vector<16x7xi1>, vector<16x7xf32>
    %cst_1 = arith.constant dense<0xFF800000> : vector<16xf32>
    %6 = vector.multi_reduction <maximumf>, %5, %cst_1 [1] : vector<16x7xf32> to vector<16xf32>
    %7 = vector.shape_cast %6 : vector<16xf32> to vector<16x1xf32>
    %8 = vector.extract_strided_slice %0 {offsets = [0, 6], sizes = [16, 1], strides = [1, 1]} : vector<16x7xf32> to vector<16x1xf32>
    %9 = arith.maximumf %7, %8 : vector<16x1xf32>
    %10 = vector.broadcast %9 : vector<16x1xf32> to vector<16x7xf32>
    %11 = arith.subf %0, %10 : vector<16x7xf32>
    %12 = math.exp %11 : vector<16x7xf32>
    %cst_2 = arith.constant dense<0.000000e+00> : vector<16xf32>
    %13 = vector.multi_reduction <add>, %12, %cst_2 [1] : vector<16x7xf32> to vector<16xf32>
    %14 = vector.shape_cast %13 : vector<16xf32> to vector<16x1xf32>
    %15 = arith.subf %7, %9 : vector<16x1xf32>
    %16 = math.exp %15 : vector<16x1xf32>
    %17 = arith.divf %16, %14 : vector<16x1xf32>
    %18 = vector.broadcast %7 : vector<16x1xf32> to vector<16x7xf32>
    %19 = arith.cmpf oge, %5, %18 : vector<16x7xf32>
    %20 = arith.andi %3, %19 : vector<16x7xi1>
    %c6_i32_3 = arith.constant 6 : i32
    %21 = vector.broadcast %c6_i32_3 : i32 to vector<16x7xi32>
    %22 = arith.select %20, %1, %21 : vector<16x7xi1>, vector<16x7xi32>
    %cst_4 = arith.constant dense<2147483647> : vector<16xi32>
    %23 = vector.multi_reduction <minsi>, %22, %cst_4 [1] : vector<16x7xi32> to vector<16xi32>
    %24 = vector.shape_cast %23 : vector<16xi32> to vector<16x1xi32>
    %c0_5 = arith.constant 0 : index
    %c0_6 = arith.constant 0 : index
    %25 = vector.load %arg6[%c0_5, %c0_6] : memref<16x1xi32, #tpu.memory_space<vmem>>, vector<16x1xi32>
    tpu.vector_store %arg6[%c0_5, %c0_6], %24 {strides = array<i32>} : memref<16x1xi32, #tpu.memory_space<vmem>>, vector<16x1xi32>,
    %c0_7 = arith.constant 0 : index
    %c0_8 = arith.constant 0 : index
    %26 = vector.load %arg2[%c0_7, %c0_8] : memref<16x16xf32, #tpu.memory_space<vmem>>, vector<16x16xf32>
    %27 = arith.negf %26 : vector<16x16xf32>
    %28 = math.exp %27 : vector<16x16xf32>
    %cst_9 = arith.constant 1.000000e+00 : f32
    %29 = vector.broadcast %cst_9 : f32 to vector<16x16xf32>
    %30 = arith.addf %29, %28 : vector<16x16xf32>
    %31 = arith.divf %29, %30 : vector<16x16xf32>
    %32 = vector.broadcast %17 : vector<16x1xf32> to vector<16x16xf32>
    %33 = arith.mulf %31, %32 : vector<16x16xf32>
    %c0_10 = arith.constant 0 : index
    %c0_11 = arith.constant 0 : index
    %34 = vector.load %arg7[%c0_10, %c0_11] : memref<16x16xf32, #tpu.memory_space<vmem>>, vector<16x16xf32>
    tpu.vector_store %arg7[%c0_10, %c0_11], %33 {strides = array<i32>} : memref<16x16xf32, #tpu.memory_space<vmem>>, vector<16x16xf32>,
    %c0_12 = arith.constant 0 : index
    %c0_13 = arith.constant 0 : index
    %35 = vector.load %arg5[%c0_12, %c0_13] : memref<16x4xf32, #tpu.memory_space<vmem>>, vector<16x4xf32>
    %c0_14 = arith.constant 0 : index
    %c0_15 = arith.constant 0 : index
    %36 = vector.load %arg3[%c0_14, %c0_15] : memref<16x4xf32, #tpu.memory_space<vmem>>, vector<16x4xf32>
    %37 = vector.extract_strided_slice %36 {offsets = [0, 0], sizes = [16, 2], strides = [1, 1]} : vector<16x4xf32> to vector<16x2xf32>
    %38 = vector.extract_strided_slice %36 {offsets = [0, 2], sizes = [16, 2], strides = [1, 1]} : vector<16x4xf32> to vector<16x2xf32>
    %cst_16 = arith.constant 5.000000e-01 : f32
    %39 = vector.broadcast %cst_16 : f32 to vector<16x2xf32>
    %40 = arith.mulf %39, %38 : vector<16x2xf32>
    %41 = arith.subf %37, %40 : vector<16x2xf32>
    %42 = arith.addf %37, %40 : vector<16x2xf32>
    %43 = tpu.concatenate %41, %42 in 1 : vector<16x2xf32>, vector<16x2xf32> -> vector<16x4xf32>
    %44 = arith.mulf %43, %35 : vector<16x4xf32>
    %c0_17 = arith.constant 0 : index
    %c0_18 = arith.constant 0 : index
    %45 = vector.load %arg8[%c0_17, %c0_18] : memref<16x4xf32, #tpu.memory_space<vmem>>, vector<16x4xf32>
    tpu.vector_store %arg8[%c0_17, %c0_18], %44 {strides = array<i32>} : memref<16x4xf32, #tpu.memory_space<vmem>>, vector<16x4xf32>,
    %c0_19 = arith.constant 0 : index
    %c0_20 = arith.constant 0 : index
    %46 = vector.load %arg4[%c0_19, %c0_20] : memref<16x4xf32, #tpu.memory_space<vmem>>, vector<16x4xf32>
    %47 = vector.extract_strided_slice %46 {offsets = [0, 0], sizes = [16, 2], strides = [1, 1]} : vector<16x4xf32> to vector<16x2xf32>
    %48 = vector.extract_strided_slice %46 {offsets = [0, 2], sizes = [16, 2], strides = [1, 1]} : vector<16x4xf32> to vector<16x2xf32>
    %cst_21 = arith.constant 5.000000e-01 : f32
    %49 = vector.broadcast %cst_21 : f32 to vector<16x2xf32>
    %50 = arith.mulf %49, %48 : vector<16x2xf32>
    %51 = arith.subf %47, %50 : vector<16x2xf32>
    %52 = arith.addf %47, %50 : vector<16x2xf32>
    %53 = tpu.concatenate %51, %52 in 1 : vector<16x2xf32>, vector<16x2xf32> -> vector<16x4xf32>
    %54 = arith.mulf %53, %35 : vector<16x4xf32>
    %c0_22 = arith.constant 0 : index
    %c0_23 = arith.constant 0 : index
    %55 = vector.load %arg9[%c0_22, %c0_23] : memref<16x4xf32, #tpu.memory_space<vmem>>, vector<16x4xf32>
    tpu.vector_store %arg9[%c0_22, %c0_23], %54 {strides = array<i32>} : memref<16x4xf32, #tpu.memory_space<vmem>>, vector<16x4xf32>,
    return
  }
  func.func @transform_0(%arg0: i32) -> (i32, i32) {
    %c0_i32 = arith.constant 0 : i32
    %c0_i32_0 = arith.constant 0 : i32
    return %arg0, %c0_i32 : i32, i32
  }
  func.func @transform_1(%arg0: i32) -> (i32, i32) {
    %c0_i32 = arith.constant 0 : i32
    %c0_i32_0 = arith.constant 0 : i32
    return %arg0, %c0_i32 : i32, i32
  }
  func.func @transform_2(%arg0: i32) -> (i32, i32) {
    %c0_i32 = arith.constant 0 : i32
    %c0_i32_0 = arith.constant 0 : i32
    return %arg0, %c0_i32 : i32, i32
  }
  func.func @transform_3(%arg0: i32) -> (i32, i32) {
    %c0_i32 = arith.constant 0 : i32
    %c0_i32_0 = arith.constant 0 : i32
    return %arg0, %c0_i32 : i32, i32
  }
  func.func @transform_4(%arg0: i32) -> (i32, i32) {
    %c0_i32 = arith.constant 0 : i32
    %c0_i32_0 = arith.constant 0 : i32
    return %arg0, %c0_i32 : i32, i32
  }
  func.func @transform_5(%arg0: i32) -> (i32, i32) {
    %c0_i32 = arith.constant 0 : i32
    %c0_i32_0 = arith.constant 0 : i32
    return %arg0, %c0_i32 : i32, i32
  }
  func.func @transform_6(%arg0: i32) -> (i32, i32) {
    %c0_i32 = arith.constant 0 : i32
    %c0_i32_0 = arith.constant 0 : i32
    return %arg0, %c0_i32 : i32, i32
  }
  func.func @transform_7(%arg0: i32) -> (i32, i32) {
    %c0_i32 = arith.constant 0 : i32
    %c0_i32_0 = arith.constant 0 : i32
    return %arg0, %c0_i32 : i32, i32
  }
  func.func @transform_8(%arg0: i32) -> (i32, i32) {
    %c0_i32 = arith.constant 0 : i32
    %c0_i32_0 = arith.constant 0 : i32
    return %arg0, %c0_i32 : i32, i32
  }
}

</mosaic_0001>

<llo_original>
// kernel: tpu_custom_call.1
$region0: #{tpu_custom_call.1}
  #allocation0 [shape = 'u32[]', space=smem, size = 0x4, offset = 0x4, fixed_abs, tag = 'smem constant byte address 0x4 - core index']
  #allocation1 [shape = 'u32[144,128]{1,0:T(1,128)}', space=vmem, size = 0x12000, scoped, tag = 'internal scratch']
  %s0 = inlined_call_operand.vmem [shape: f32[16,7], index: 0, kind: input, shape index: {}]
  %s1 = inlined_call_operand.vmem [shape: f32[16,16], index: 1, kind: input, shape index: {}]
  %s2 = inlined_call_operand.vmem [shape: f32[16,4], index: 2, kind: input, shape index: {}]
  %s3 = inlined_call_operand.vmem [shape: f32[16,4], index: 3, kind: input, shape index: {}]
  %s4 = inlined_call_operand.vmem [shape: f32[16,4], index: 4, kind: input, shape index: {}]
  %s5 = inlined_call_operand.vmem [shape: s32[16,1], index: 5, kind: output, shape index: {0}]
  %s6 = inlined_call_operand.hbm [shape: f32[16,16], index: 6, kind: output, shape index: {1}]
  %s7 = inlined_call_operand.vmem [shape: f32[16,4], index: 7, kind: output, shape index: {2}]
  %s8 = inlined_call_operand.vmem [shape: f32[16,4], index: 8, kind: output, shape index: {3}]
  %9 = xla_tuple %s5, %s6, %s7, %s8
  %s10 = sld [smem:[#allocation0]]
  $region54: #{tpu_custom_call.1} parent=0
    _
  %s12 = ssub.s32 1, %s10
  %s13 = scalar_select 0, %s12, %s10
  $region1: #{tpu_custom_call.1} parent=0
    #allocation2 [shape = 'u8[8192]{0}', space=vmem, size = 0x2000, scoped, tag = 'output window, operand 1, single buffered']
    #allocation3 [shape = 's32[1]{0}', space=sflag, size = 0x4, scoped, tag = 'scoped memory for tpu_custom_call.1']
    %14 = vsyncpa [#allocation3], 0
    // Predicated region
    $region2: #{tpu_custom_call.1} parent=1 // pred_check
      _
    $region3: #{tpu_custom_call.1} parent=1 // pred_check_branch
      %16 = sbr.rel (0) target = $region5
    $region4: #{tpu_custom_call.1} parent=1 // pred_region
      _
    $region5: #{tpu_custom_call.1} parent=1 // pred_fallthru
      _
    // Predicated region
    $region6: #{tpu_custom_call.1} parent=1 // pred_check
      _
    $region7: #{tpu_custom_call.1} parent=1 // pred_check_branch
      %18 = sbr.rel (0) target = $region9
    $region8: #{tpu_custom_call.1} parent=1 // pred_region
      _
    $region9: #{tpu_custom_call.1} parent=1 // pred_fallthru
      _
    // Predicated region
    $region10: #{tpu_custom_call.1} parent=1 // pred_check
      _
    $region11: #{tpu_custom_call.1} parent=1 // pred_check_branch
      %20 = sbr.rel (0) target = $region13
    $region12: #{tpu_custom_call.1} parent=1 // pred_region
      _
    $region13: #{tpu_custom_call.1} parent=1 // pred_fallthru
      _
    // Predicated region
    $region14: #{tpu_custom_call.1} parent=1 // pred_check
      _
    $region15: #{tpu_custom_call.1} parent=1 // pred_check_branch
      %22 = sbr.rel (0) target = $region17
    $region16: #{tpu_custom_call.1} parent=1 // pred_region
      _
    $region17: #{tpu_custom_call.1} parent=1 // pred_fallthru
      _
    // Predicated region
    $region18: #{tpu_custom_call.1} parent=1 // pred_check
      _
    $region19: #{tpu_custom_call.1} parent=1 // pred_check_branch
      %24 = sbr.rel (0) target = $region21
    $region20: #{tpu_custom_call.1} parent=1 // pred_region
      _
    $region21: #{tpu_custom_call.1} parent=1 // pred_fallthru
      _
    %v25 = vld [vmem:[%s0] sm:$0xff]
    %v26 = vld [vmem:[%s0 + $0x8] sm:$0xff]
    %v27 = vlaneseq
    %v28 = vand.u32 %v27, 127
    %vm29 = vcmp.lt.s32.totalorder %v28, 6
    %v30 = vsel %vm29, %v25, -inf
    %v31 = vsel %vm29, %v26, -inf
    %vm32 = vcmask 56320
    %v33 = vsel %vm32, %v30, -inf
    %34 = vmax.xlane.f32.xlu0 %v33
    %v35 = vpop.xlane.xlu0 %34
    %v36 = vsel %vm32, %v31, -inf
    %37 = vmax.xlane.f32.xlu0 %v36
    %v38 = vpop.xlane.xlu0 %37
    %v39 = vmax.f32 %v35, %v25
    %v40 = vmax.f32 %v38, %v26
    %42 = vset.pattern.permute.xlu0 6
    %43 = vperm.xlu0 %42, %v39
    %v44 = vpop.permute.xlu0 %43
    %47 = vset.pattern.permute.xlu0 6
    %48 = vperm.xlu0 %47, %v40
    %v49 = vpop.permute.xlu0 %48
    %v51 = vsub.f32 %v25, %v44
    %v52 = vsub.f32 %v26, %v49
    %v53 = vmul.f32 %v51, 1.442695
    %v54 = vpow.pop %v53
    %v55 = vmul.f32 %v52, 1.442695
    %v56 = vpow.pop %v55
    %v57 = vsel %vm32, %v54, 0.0
    %58 = vadd.xlane.f32.xlu0 %v57
    %v59 = vpop.xlane.xlu0 %58
    %v60 = vsel %vm32, %v56, 0.0
    %61 = vadd.xlane.f32.xlu0 %v60
    %v62 = vpop.xlane.xlu0 %61
    %v63 = vsub.f32 %v35, %v39
    %v64 = vsub.f32 %v38, %v40
    %v65 = vmul.f32 %v63, 1.442695
    %v66 = vpow.pop %v65
    %v67 = vmul.f32 %v64, 1.442695
    %v68 = vpow.pop %v67
    %v69 = vrcp.pop %v59
    %v70 = vmul.f32 %v66, %v69
    %v71 = vrcp.pop %v62
    %v72 = vmul.f32 %v68, %v71
    %vm73 = vcmp.ge.f32.partialorder %v30, %v35
    %vm74 = vcmp.ge.f32.partialorder %v31, %v38
    %vm75 = vmand %vm29, %vm73
    %vm76 = vmand %vm29, %vm74
    %v77 = vsel %vm75, %v28, 6
    %v78 = vsel %vm76, %v28, 6
    %v79 = vsel %vm32, %v77, 2147483647
    %v80 = vand.u32 %v79, 65535
    %v81 = vshra.s32 %v79, 16
    %v82 = vcvt.s32.f32 %v80
    %v83 = vcvt.s32.f32 %v81
    %84 = vmin.xlane.f32.xlu0 %v83
    %v85 = vpop.xlane.xlu0 %84
    %vm86 = vcmp.eq.f32.partialorder %v83, %v85
    %v87 = vsel %vm86, %v82, inf
    %88 = vmin.xlane.f32.xlu0 %v87
    %v89 = vpop.xlane.xlu0 %88
    %v90 = vcvt.f32.s32 %v89
    %v91 = vcvt.f32.s32 %v85
    %v92 = vshll.u32 %v91, 16
    %v93 = vadd.s32 %v92, %v90
    %v94 = vsel %vm32, %v78, 2147483647
    %v95 = vand.u32 %v94, 65535
    %v96 = vshra.s32 %v94, 16
    %v97 = vcvt.s32.f32 %v95
    %v98 = vcvt.s32.f32 %v96
    %99 = vmin.xlane.f32.xlu0 %v98
    %v100 = vpop.xlane.xlu0 %99
    %vm101 = vcmp.eq.f32.partialorder %v98, %v100
    %v102 = vsel %vm101, %v97, inf
    %103 = vmin.xlane.f32.xlu0 %v102
    %v104 = vpop.xlane.xlu0 %103
    %v105 = vcvt.f32.s32 %v104
    %v106 = vcvt.f32.s32 %v100
    %v107 = vshll.u32 %v106, 16
    %v108 = vadd.s32 %v107, %v105
    %vm109 = vcmask 7168
    %110 = vst.msk [vmem:[%s5] sm:$0xff] %vm109, %v93
    %111 = vst.msk [vmem:[%s5 + $0x8] sm:$0xff] %vm109, %v108
    %v112 = vld [vmem:[%s1] sm:$0xff]
    %v113 = vld [vmem:[%s1 + $0x8] sm:$0xff]
    %v114 = vxor.u32 %v112, 2147483648
    %v115 = vxor.u32 %v113, 2147483648
    %v116 = vmul.f32 %v114, 1.442695
    %v117 = vpow.pop %v116
    %v118 = vmul.f32 %v115, 1.442695
    %v119 = vpow.pop %v118
    %v120 = vadd.f32 %v117, 1.0
    %v121 = vadd.f32 %v119, 1.0
    %v122 = vrcp.pop %v120
    %v123 = vmul.f32 1.0, %v122
    %v124 = vrcp.pop %v121
    %v125 = vmul.f32 1.0, %v124
    %127 = vset.pattern.permute.xlu0 6
    %128 = vperm.xlu0 %127, %v70
    %v129 = vpop.permute.xlu0 %128
    %132 = vset.pattern.permute.xlu0 6
    %133 = vperm.xlu0 %132, %v72
    %v134 = vpop.permute.xlu0 %133
    %v136 = vmul.f32 %v123, %v129
    %v137 = vmul.f32 %v125, %v134
    %vm138 = vcmask 130048
    %139 = vst.msk [vmem:[#allocation2] sm:$0xff] %vm138, %v136
    %140 = vst.msk [vmem:[#allocation2 + $0x8] sm:$0xff] %vm138, %v137
    %v141 = vld [vmem:[%s4] sm:$0xff]
    %v142 = vld [vmem:[%s4 + $0x8] sm:$0xff]
    %v143 = vld [vmem:[%s2] sm:$0xff]
    %v144 = vld [vmem:[%s2 + $0x8] sm:$0xff]
    %v145 = vmul.f32 %v143, 0.5
    %v146 = vmul.f32 %v144, 0.5
    %149 = vrot.lane.b32.xlu0 %v145, 126
    %v150 = vpop.permute.xlu0 %149
    %151 = vrot.lane.b32.xlu0 %v146, 126
    %v152 = vpop.permute.xlu0 %151
    %v155 = vsub.f32 %v143, %v150
    %v156 = vsub.f32 %v144, %v152
    %v157 = vadd.f32 %v143, %v150
    %v158 = vadd.f32 %v144, %v152
    %161 = vrot.lane.b32.xlu0 %v157, 2
    %v162 = vpop.permute.xlu0 %161
    %163 = vrot.lane.b32.xlu0 %v158, 2
    %v164 = vpop.permute.xlu0 %163
    %vm167 = vcmask 15360
    %v168 = vsel %vm167, %v155, %v162
    %v169 = vsel %vm167, %v156, %v164
    %v170 = vmul.f32 %v168, %v141
    %v171 = vmul.f32 %v169, %v142
    %vm172 = vcmask 31744
    %173 = vst.msk [vmem:[%s7] sm:$0xff] %vm172, %v170
    %174 = vst.msk [vmem:[%s7 + $0x8] sm:$0xff] %vm172, %v171
    %v175 = vld [vmem:[%s3] sm:$0xff]
    %v176 = vld [vmem:[%s3 + $0x8] sm:$0xff]
    %v177 = vmul.f32 %v175, 0.5
    %v178 = vmul.f32 %v176, 0.5
    %181 = vrot.lane.b32.xlu0 %v177, 126
    %v182 = vpop.permute.xlu0 %181
    %183 = vrot.lane.b32.xlu0 %v178, 126
    %v184 = vpop.permute.xlu0 %183
    %v187 = vsub.f32 %v175, %v182
    %v188 = vsub.f32 %v176, %v184
    %v189 = vadd.f32 %v175, %v182
    %v190 = vadd.f32 %v176, %v184
    %193 = vrot.lane.b32.xlu0 %v189, 2
    %v194 = vpop.permute.xlu0 %193
    %195 = vrot.lane.b32.xlu0 %v190, 2
    %v196 = vpop.permute.xlu0 %195
    %v199 = vsel %vm167, %v187, %v194
    %v200 = vsel %vm167, %v188, %v196
    %v201 = vmul.f32 %v199, %v141
    %v202 = vmul.f32 %v200, %v142
    %203 = vst.msk [vmem:[%s8] sm:$0xff] %vm172, %v201
    %204 = vst.msk [vmem:[%s8 + $0x8] sm:$0xff] %vm172, %v202
    // Predicated region
    $region22: #{tpu_custom_call.1} parent=1 // pred_check
      _
    $region23: #{tpu_custom_call.1} parent=1 // pred_check_branch
      %206 = sbr.rel (0) target = $region25
    $region24: #{tpu_custom_call.1} parent=1 // pred_region
      _
    $region25: #{tpu_custom_call.1} parent=1 // pred_fallthru
      _
    // Predicated region
    $region26: #{tpu_custom_call.1} parent=1 // pred_check
      _
    $region27: #{tpu_custom_call.1} parent=1 // pred_check_branch
      %208 = sbr.rel (0) target = $region29
    $region28: #{tpu_custom_call.1} parent=1 // pred_region
      %s210 = ssub.s32 256, 256
      %211 = vsyncadd [#allocation3], %s210
      %s212 = sshll.u32 [#allocation2], 4
      %s213 = int_to_ptr.vmem [resolvable:$true] %s212
      %218 = dma.vmem_to_hbm [thread:$0]  %s213, 256, %s6, [#allocation3], 128, 128, 8
    $region29: #{tpu_custom_call.1} parent=1 // pred_fallthru
      _
    // Predicated region
    $region30: #{tpu_custom_call.1} parent=1 // pred_check
      _
    $region31: #{tpu_custom_call.1} parent=1 // pred_check_branch
      %220 = sbr.rel (0) target = $region33
    $region32: #{tpu_custom_call.1} parent=1 // pred_region
      _
    $region33: #{tpu_custom_call.1} parent=1 // pred_fallthru
      _
    // Predicated region
    $region34: #{tpu_custom_call.1} parent=1 // pred_check
      _
    $region35: #{tpu_custom_call.1} parent=1 // pred_check_branch
      %222 = sbr.rel (0) target = $region37
    $region36: #{tpu_custom_call.1} parent=1 // pred_region
      _
    $region37: #{tpu_custom_call.1} parent=1 // pred_fallthru
      _
    // Predicated region
    $region38: #{tpu_custom_call.1} parent=1 // pred_check
      _
    $region39: #{tpu_custom_call.1} parent=1 // pred_check_branch
      %224 = sbr.rel (0) target = $region41
    $region40: #{tpu_custom_call.1} parent=1 // pred_region
      _
    $region41: #{tpu_custom_call.1} parent=1 // pred_fallthru
      _
    // Predicated region
    $region42: #{tpu_custom_call.1} parent=1 // pred_check
      _
    $region43: #{tpu_custom_call.1} parent=1 // pred_check_branch
      %226 = sbr.rel (0) target = $region45
    $region44: #{tpu_custom_call.1} parent=1 // pred_region
      %227 = dma.done [#allocation3], 256
    $region45: #{tpu_custom_call.1} parent=1 // pred_fallthru
      _
    // Predicated region
    $region46: #{tpu_custom_call.1} parent=1 // pred_check
      _
    $region47: #{tpu_custom_call.1} parent=1 // pred_check_branch
      %229 = sbr.rel (0) target = $region49
    $region48: #{tpu_custom_call.1} parent=1 // pred_region
      _
    $region49: #{tpu_custom_call.1} parent=1 // pred_fallthru
      _
    // Predicated region
    $region50: #{tpu_custom_call.1} parent=1 // pred_check
      _
    $region51: #{tpu_custom_call.1} parent=1 // pred_check_branch
      %231 = sbr.rel (0) target = $region53
    $region52: #{tpu_custom_call.1} parent=1 // pred_region
      _
    $region53: #{tpu_custom_call.1} parent=1 // pred_fallthru
      _
    %232 = vsyncpa [#allocation3], 1

</llo_original>
